<compile_context>
chip_gen: v7x
topology: tpu7x:2x2x1
jax: 0.10.0
libtpu: 0.0.40
codegen_flags: <defaults>
</compile_context>

<pallas_src>
import functools

import jax
import jax.numpy as jnp
from jax.experimental import pallas as pl
from jax.experimental.pallas import tpu as pltpu

_VLANE = 128  # lane-dense width for the padded critic column


def _policy_value_kernel(x_ref, wp_ref, bp_ref, wv_ref, bv_ref,
                         logits_ref, value_ref):
    j = pl.program_id(1)  # vocab tile index (innermost, "arbitrary")

    x = x_ref[...]  # (tile_m, H) activation row tile, resident across j

    # Policy head: one (H, tile_n) vocab slab per inner grid step.
    acc = jnp.dot(x, wp_ref[...], preferred_element_type=jnp.float32)
    logits_ref[...] = (acc + bp_ref[...]).astype(logits_ref.dtype)

    # Critic head: depends only on the row tile.  Its output block is
    # revisited across the (arbitrary) vocab axis, so write it only at j == 0;
    # the VMEM-resident block carries it to the final writeback.
    @pl.when(j == 0)
    def _():
        v = jnp.dot(x, wv_ref[...], preferred_element_type=jnp.float32)
        value_ref[...] = (v + bv_ref[...]).astype(value_ref.dtype)


def _round_up(a, b):
    return (a + b - 1) // b * b


@functools.partial(
    jax.jit,
    static_argnames=("tile_m", "tile_n", "compute_dtype", "out_dtype"),
)
def policy_and_value_forward(x, w_pol, b_pol, w_val, b_val, *,
                             tile_m=256, tile_n=256,
                             compute_dtype=None, out_dtype=None):
    """x: (B, S, H). Returns (logits (B, S, V), values (B, S, 1))."""
    B, S, H = x.shape
    V = w_pol.shape[1]
    assert w_pol.shape[0] == H and w_val.shape == (H, 1)
    N = B * S
    out_dtype = out_dtype or x.dtype
    compute_dtype = compute_dtype or x.dtype

    # Effective tiles: never larger than the (rounded-up) problem size.
    tile_m = min(tile_m, _round_up(N, 8))
    tile_n = min(tile_n, _round_up(V, 128))

    N_pad = _round_up(N, tile_m)
    V_pad = _round_up(V, tile_n)

    x2 = x.reshape(N, H).astype(compute_dtype)
    if N_pad != N:
        x2 = jnp.pad(x2, ((0, N_pad - N), (0, 0)))

    wp = w_pol.astype(compute_dtype)
    bp = b_pol.reshape(1, V).astype(jnp.float32)
    if V_pad != V:
        wp = jnp.pad(wp, ((0, 0), (0, V_pad - V)))
        bp = jnp.pad(bp, ((0, 0), (0, V_pad - V)))

    # Lane-dense critic: pad the single value column out to 128 lanes so the
    # store path uses full (unmasked) vector stores; slice column 0 afterwards.
    wv = jnp.pad(w_val.astype(compute_dtype), ((0, 0), (0, _VLANE - 1)))
    bv = jnp.pad(b_val.reshape(1, 1).astype(jnp.float32),
                 ((0, 0), (0, _VLANE - 1)))

    grid = (N_pad // tile_m, V_pad // tile_n)

    logits, values = pl.pallas_call(
        _policy_value_kernel,
        out_shape=(
            jax.ShapeDtypeStruct((N_pad, V_pad), out_dtype),
            jax.ShapeDtypeStruct((N_pad, _VLANE), out_dtype),
        ),
        grid_spec=pltpu.PrefetchScalarGridSpec(
            num_scalar_prefetch=0,
            grid=grid,
            in_specs=[
                pl.BlockSpec((tile_m, H), lambda i, j: (i, 0)),        # x row tile
                pl.BlockSpec((H, tile_n), lambda i, j: (0, j)),        # W_pol slab
                pl.BlockSpec((1, tile_n), lambda i, j: (0, j)),        # b_pol slab
                pl.BlockSpec((H, _VLANE), lambda i, j: (0, 0)),        # W_val (padded)
                pl.BlockSpec((1, _VLANE), lambda i, j: (0, 0)),        # b_val (padded)
            ],
            out_specs=[
                pl.BlockSpec((tile_m, tile_n), lambda i, j: (i, j)),   # logits tile
                pl.BlockSpec((tile_m, _VLANE), lambda i, j: (i, 0)),   # values tile
            ],
        ),
        compiler_params=pltpu.CompilerParams(
            dimension_semantics=("parallel", "arbitrary"),
            vmem_limit_bytes=48 * 1024 * 1024,
        ),
    )(x2, wp, bp, wv, bv)

    logits = logits[:N, :V].reshape(B, S, V)
    values = values[:N, :1].reshape(B, S, 1)
    return logits, values


if __name__ == "__main__":
    B, S, H, V = 2, 8, 32, 256

    key = jax.random.PRNGKey(0)
    kx, kwp, kbp, kwv, kbv = jax.random.split(key, 5)

    x = jax.random.normal(kx, (B, S, H), dtype=jnp.float32)
    w_pol = jax.random.normal(kwp, (H, V), dtype=jnp.float32) * 0.02
    b_pol = jax.random.normal(kbp, (V,), dtype=jnp.float32) * 0.02
    w_val = jax.random.normal(kwv, (H, 1), dtype=jnp.float32) * 0.02
    b_val = jax.random.normal(kbv, (1,), dtype=jnp.float32) * 0.02

    # Reference (mirrors the PyTorch forward exactly: (policy(x), critic(x))).
    ref_logits = x @ w_pol + b_pol
    ref_values = x @ w_val + b_val

    # f32 compute path: tight tolerance.
    logits, values = jax.block_until_ready(
        policy_and_value_forward(x, w_pol, b_pol, w_val, b_val)
    )
    assert logits.shape == (B, S, V) and values.shape == (B, S, 1)
    assert jnp.allclose(logits, ref_logits, atol=1e-5, rtol=1e-5)
    assert jnp.allclose(values, ref_values, atol=1e-5, rtol=1e-5)

    # bf16 compute path (f32 accumulate): relaxed tolerance vs. f32 reference.
    logits_bf, values_bf = jax.block_until_ready(
        policy_and_value_forward(x, w_pol, b_pol, w_val, b_val,
                                 compute_dtype=jnp.bfloat16)
    )
    assert jnp.allclose(logits_bf, ref_logits, atol=5e-2, rtol=5e-2)
    assert jnp.allclose(values_bf, ref_values, atol=5e-2, rtol=5e-2)

    print("KERNEL_OK")
</pallas_src>

<mosaic_0001>
module attributes {stable_mosaic.version = 11 : i64} {
  func.func @_policy_value_kernel(%arg0: i32, %arg1: i32, %arg2: memref<16x32xf32, #tpu.memory_space<vmem>>, %arg3: memref<32x256xf32, #tpu.memory_space<vmem>>, %arg4: memref<1x256xf32, #tpu.memory_space<vmem>>, %arg5: memref<32x128xf32, #tpu.memory_space<vmem>>, %arg6: memref<1x128xf32, #tpu.memory_space<vmem>>, %arg7: memref<16x256xf32, #tpu.memory_space<vmem>>, %arg8: memref<16x128xf32, #tpu.memory_space<vmem>>) attributes {dimension_semantics = [#tpu.dimension_semantics<parallel>, #tpu.dimension_semantics<arbitrary>], iteration_bounds = array<i64: 1, 1>, scalar_prefetch = 0 : i64, scratch_operands = 0 : i64, tpu.core_type = #tpu.core_type<tc>, window_params = [{transform_indices = @transform_0, window_bounds = array<i64: 16, 32>}, {transform_indices = @transform_1, window_bounds = array<i64: 32, 256>}, {transform_indices = @transform_2, window_bounds = array<i64: 1, 256>}, {pipeline_mode = #tpu.pipeline_mode<synchronous>, transform_indices = @transform_3, window_bounds = array<i64: 32, 128>}, {pipeline_mode = #tpu.pipeline_mode<synchronous>, transform_indices = @transform_4, window_bounds = array<i64: 1, 128>}, {transform_indices = @transform_5, window_bounds = array<i64: 16, 256>}, {transform_indices = @transform_6, window_bounds = array<i64: 16, 128>}]} {
    %c0 = arith.constant 0 : index
    %c0_0 = arith.constant 0 : index
    %0 = vector.load %arg2[%c0, %c0_0] : memref<16x32xf32, #tpu.memory_space<vmem>>, vector<16x32xf32>
    %c0_1 = arith.constant 0 : index
    %c0_2 = arith.constant 0 : index
    %1 = vector.load %arg3[%c0_1, %c0_2] : memref<32x256xf32, #tpu.memory_space<vmem>>, vector<32x256xf32>
    %cst = arith.constant dense<0.000000e+00> : vector<16x256xf32>
    %2 = tpu.matmul %0, %1, %cst {dimension_numbers = #tpu.dot_dimension_numbers<[1], [0], [0], [1], [0, 0, 1, 1], [], []>} : vector<16x32xf32>, vector<32x256xf32>, vector<16x256xf32> -> vector<16x256xf32>
    %c0_3 = arith.constant 0 : index
    %c0_4 = arith.constant 0 : index
    %3 = vector.load %arg4[%c0_3, %c0_4] : memref<1x256xf32, #tpu.memory_space<vmem>>, vector<1x256xf32>
    %4 = vector.broadcast %3 : vector<1x256xf32> to vector<16x256xf32>
    %5 = arith.addf %2, %4 : vector<16x256xf32>
    %c0_5 = arith.constant 0 : index
    %c0_6 = arith.constant 0 : index
    %6 = vector.load %arg7[%c0_5, %c0_6] : memref<16x256xf32, #tpu.memory_space<vmem>>, vector<16x256xf32>
    tpu.vector_store %arg7[%c0_5, %c0_6], %5 {strides = array<i32>} : memref<16x256xf32, #tpu.memory_space<vmem>>, vector<16x256xf32>,
    %c0_i32 = arith.constant 0 : i32
    %7 = arith.cmpi eq, %arg1, %c0_i32 : i32
    %8 = arith.extui %7 : i1 to i32
    %c0_i32_7 = arith.constant 0 : i32
    %9 = arith.cmpi ne, %8, %c0_i32_7 : i32
    scf.if %9 {
      %c0_8 = arith.constant 0 : index
      %c0_9 = arith.constant 0 : index
      %10 = vector.load %arg5[%c0_8, %c0_9] : memref<32x128xf32, #tpu.memory_space<vmem>>, vector<32x128xf32>
      %cst_10 = arith.constant dense<0.000000e+00> : vector<16x128xf32>
      %11 = tpu.matmul %0, %10, %cst_10 {dimension_numbers = #tpu.dot_dimension_numbers<[1], [0], [0], [1], [0, 0, 1, 1], [], []>} : vector<16x32xf32>, vector<32x128xf32>, vector<16x128xf32> -> vector<16x128xf32>
      %c0_11 = arith.constant 0 : index
      %c0_12 = arith.constant 0 : index
      %12 = vector.load %arg6[%c0_11, %c0_12] : memref<1x128xf32, #tpu.memory_space<vmem>>, vector<1x128xf32>
      %13 = vector.broadcast %12 : vector<1x128xf32> to vector<16x128xf32>
      %14 = arith.addf %11, %13 : vector<16x128xf32>
      %c0_13 = arith.constant 0 : index
      %c0_14 = arith.constant 0 : index
      %15 = vector.load %arg8[%c0_13, %c0_14] : memref<16x128xf32, #tpu.memory_space<vmem>>, vector<16x128xf32>
      tpu.vector_store %arg8[%c0_13, %c0_14], %14 {strides = array<i32>} : memref<16x128xf32, #tpu.memory_space<vmem>>, vector<16x128xf32>,
    } else {
    }
    return
  }
  func.func @transform_0(%arg0: i32, %arg1: i32) -> (i32, i32) {
    %c0_i32 = arith.constant 0 : i32
    %c0_i32_0 = arith.constant 0 : i32
    return %arg0, %c0_i32 : i32, i32
  }
  func.func @transform_1(%arg0: i32, %arg1: i32) -> (i32, i32) {
    %c0_i32 = arith.constant 0 : i32
    %c0_i32_0 = arith.constant 0 : i32
    return %c0_i32, %arg1 : i32, i32
  }
  func.func @transform_2(%arg0: i32, %arg1: i32) -> (i32, i32) {
    %c0_i32 = arith.constant 0 : i32
    %c0_i32_0 = arith.constant 0 : i32
    return %c0_i32, %arg1 : i32, i32
  }
  func.func @transform_3(%arg0: i32, %arg1: i32) -> (i32, i32) {
    %c0_i32 = arith.constant 0 : i32
    %c0_i32_0 = arith.constant 0 : i32
    %c0_i32_1 = arith.constant 0 : i32
    return %c0_i32, %c0_i32_0 : i32, i32
  }
  func.func @transform_4(%arg0: i32, %arg1: i32) -> (i32, i32) {
    %c0_i32 = arith.constant 0 : i32
    %c0_i32_0 = arith.constant 0 : i32
    %c0_i32_1 = arith.constant 0 : i32
    return %c0_i32, %c0_i32_0 : i32, i32
  }
  func.func @transform_5(%arg0: i32, %arg1: i32) -> (i32, i32) {
    %c0_i32 = arith.constant 0 : i32
    return %arg0, %arg1 : i32, i32
  }
  func.func @transform_6(%arg0: i32, %arg1: i32) -> (i32, i32) {
    %c0_i32 = arith.constant 0 : i32
    %c0_i32_0 = arith.constant 0 : i32
    return %arg0, %c0_i32 : i32, i32
  }
}

</mosaic_0001>

<llo_original>
// kernel: policy_and_value_forward.1
$region0: #{policy_and_value_forward.1}
  #allocation0 [shape = 'u32[]', space=smem, size = 0x4, offset = 0x4, fixed_abs, tag = 'smem constant byte address 0x4 - core index']
  #allocation1 [shape = 'u32[144,128]{1,0:T(1,128)}', space=vmem, size = 0x12000, scoped, tag = 'internal scratch']
  %s0 = inlined_call_operand.vmem [shape: f32[16,32], index: 0, kind: input, shape index: {}]
  %s1 = inlined_call_operand.vmem [shape: f32[32,256], index: 1, kind: input, shape index: {}]
  %s2 = inlined_call_operand.vmem [shape: f32[1,256], index: 2, kind: input, shape index: {}]
  %s3 = inlined_call_operand.vmem [shape: f32[32,128], index: 3, kind: input, shape index: {}]
  %s4 = inlined_call_operand.vmem [shape: f32[1,128], index: 4, kind: input, shape index: {}]
  %s5 = inlined_call_operand.hbm [shape: f32[16,256], index: 5, kind: output, shape index: {0}]
  %s6 = inlined_call_operand.vmem [shape: f32[16,128], index: 6, kind: output, shape index: {1}]
  %7 = xla_tuple %s5, %s6
  %s8 = sld [smem:[#allocation0]]
  $region42: #{policy_and_value_forward.1} parent=0
    _
  %s10 = ssub.s32 1, %s8
  %s11 = scalar_select 0, %s10, %s8
  $region1: #{policy_and_value_forward.1} parent=0
    #allocation2 [shape = 'u8[16384]{0}', space=vmem, size = 0x4000, scoped, tag = 'output window, operand 0, single buffered']
    #allocation3 [shape = 's32[1]{0}', space=sflag, size = 0x4, scoped, tag = 'scoped memory for policy_and_value_forward.1']
    %12 = vsyncpa [#allocation3], 0
    // Predicated region
    $region2: #{policy_and_value_forward.1} parent=1 // pred_check
      _
    $region3: #{policy_and_value_forward.1} parent=1 // pred_check_branch
      %14 = sbr.rel (0) target = $region5
    $region4: #{policy_and_value_forward.1} parent=1 // pred_region
      _
    $region5: #{policy_and_value_forward.1} parent=1 // pred_fallthru
      _
    // Predicated region
    $region6: #{policy_and_value_forward.1} parent=1 // pred_check
      _
    $region7: #{policy_and_value_forward.1} parent=1 // pred_check_branch
      %16 = sbr.rel (0) target = $region9
    $region8: #{policy_and_value_forward.1} parent=1 // pred_region
      _
    $region9: #{policy_and_value_forward.1} parent=1 // pred_fallthru
      _
    // Predicated region
    $region10: #{policy_and_value_forward.1} parent=1 // pred_check
      _
    $region11: #{policy_and_value_forward.1} parent=1 // pred_check_branch
      %18 = sbr.rel (0) target = $region13
    $region12: #{policy_and_value_forward.1} parent=1 // pred_region
      _
    $region13: #{policy_and_value_forward.1} parent=1 // pred_fallthru
      _
    // Predicated region
    $region14: #{policy_and_value_forward.1} parent=1 // pred_check
      _
    $region15: #{policy_and_value_forward.1} parent=1 // pred_check_branch
      %20 = sbr.rel (0) target = $region17
    $region16: #{policy_and_value_forward.1} parent=1 // pred_region
      _
    $region17: #{policy_and_value_forward.1} parent=1 // pred_fallthru
      _
    // Predicated region
    $region18: #{policy_and_value_forward.1} parent=1 // pred_check
      _
    $region19: #{policy_and_value_forward.1} parent=1 // pred_check_branch
      %22 = sbr.rel (0) target = $region21
    $region20: #{policy_and_value_forward.1} parent=1 // pred_region
      _
    $region21: #{policy_and_value_forward.1} parent=1 // pred_fallthru
      _
    %v23 = vld [vmem:[%s0] sm:$0xff]
    %v24 = vld [vmem:[%s0 + $0x8] sm:$0xff]
    %v25 = vld [vmem:[%s1] sm:$0xff]
    %v26 = vld [vmem:[%s1 + $0x8] sm:$0xff]
    %v27 = vld [vmem:[%s1 + $0x10] sm:$0xff]
    %v28 = vld [vmem:[%s1 + $0x18] sm:$0xff]
    %v29 = vld [vmem:[%s1 + $0x20] sm:$0xff]
    %v30 = vld [vmem:[%s1 + $0x28] sm:$0xff]
    %v31 = vld [vmem:[%s1 + $0x30] sm:$0xff]
    %v32 = vld [vmem:[%s1 + $0x38] sm:$0xff]
    %v33 = vld [vmem:[%s2] sm:$0x3]
    %v35 = vlaneseq
    %v36 = vshrl.u32 %v35, 7
    %v37 = vsub.s32 0, %v36
    %v38 = vrot.slane %v33, %v37
    %v39 = vlaneseq
    %v40 = vshrl.u32 %v39, 7
    %v41 = vsub.s32 1, %v40
    %v42 = vrot.slane %v33, %v41
    %vm45 = vcmask 261120
    %v47 = vsel %vm45, %v23, 0
    %v50 = vsel %vm45, %v24, 0
    %52 = vmatprep.subr.mxu0 %v26
    %53 = vmatpush1.msra.mxu0 %v25
    %54 = vmatprep.subr.mxu0 %v28
    %55 = vmatpush1.msra.mxu0 %v27
    %56 = vmatprep.subr.mxu0 %v30
    %57 = vmatpush1.msra.mxu0 %v29
    %58 = vmatprep.subr.mxu0 %v32
    %59 = vmatpush1.msra.mxu0 %v31
    %60 = vmatprep.subr.mxu0 0.0
    %61 = vmatpush1.msra.mxu0 0.0
    %62 = vmatprep.subr.mxu0 0.0
    %63 = vmatpush1.msra.mxu0 0.0
    %64 = vmatprep.subr.mxu0 0.0
    %65 = vmatpush1.msra.mxu0 0.0
    %66 = vmatprep.subr.mxu0 0.0
    %67 = vmatpush1.msra.mxu0 0.0
    %68 = vmatprep.subr.mxu0 0.0
    %69 = vmatpush1.msra.mxu0 0.0
    %70 = vmatprep.subr.mxu0 0.0
    %71 = vmatpush1.msra.mxu0 0.0
    %72 = vmatprep.subr.mxu0 0.0
    %73 = vmatpush1.msra.mxu0 0.0
    %74 = vmatprep.subr.mxu0 0.0
    %75 = vmatpush1.msra.mxu0 0.0
    %76 = vmatprep.subr.mxu0 0.0
    %77 = vmatpush1.msra.mxu0 0.0
    %78 = vmatprep.subr.mxu0 0.0
    %79 = vmatpush1.msra.mxu0 0.0
    %80 = vmatprep.subr.mxu0 0.0
    %81 = vmatpush1.msra.mxu0 0.0
    %82 = vmatprep.subr.mxu0 0.0
    %83 = vmatpush1.msra.mxu0 0.0
    %84 = vmatprep.subr.mxu0 0.0
    %85 = vmatpush1.msra.mxu0 0.0
    %86 = vmatprep.subr.mxu0 0.0
    %87 = vmatpush1.msra.mxu0 0.0
    %88 = vmatprep.subr.mxu0 0.0
    %89 = vmatpush1.msra.mxu0 0.0
    %90 = vmatprep.subr.mxu0 0.0
    %91 = vmatpush1.msra.mxu0 0.0
    %92 = vmatprep.subr.mxu0 0.0
    %93 = vmatpush1.msra.mxu0 0.0
    %94 = vmatprep.subr.mxu0 0.0
    %95 = vmatpush1.msra.mxu0 0.0
    %96 = vmatprep.subr.mxu0 0.0
    %97 = vmatpush1.msra.mxu0 0.0
    %98 = vmatprep.subr.mxu0 0.0
    %99 = vmatpush1.msra.mxu0 0.0
    %100 = vmatprep.subr.mxu0 0.0
    %101 = vmatpush1.msra.mxu0 0.0
    %102 = vmatprep.subr.mxu0 0.0
    %103 = vmatpush1.msra.mxu0 0.0
    %104 = vmatprep.subr.mxu0 0.0
    %105 = vmatpush1.msra.mxu0 0.0
    %106 = vmatprep.subr.mxu0 0.0
    %107 = vmatpush1.msra.mxu0 0.0
    %108 = vmatprep.subr.mxu0 0.0
    %109 = vmatpush1.msra.mxu0 0.0
    %110 = vmatprep.subr.mxu0 0.0
    %111 = vmatpush1.msra.mxu0 0.0
    %112 = vmatprep.subr.mxu0 0.0
    %113 = vmatpush1.msra.mxu0 0.0
    %114 = vmatprep.subr.mxu0 0.0
    %115 = vmatpush1.msra.mxu0 0.0
    %116 = vmatprep.mubr.f32.mxu0 0.0
    %117 = vmatmul.mubr.f32.gmra.mrb[0].mxu0 %v47
    %v118 = vpop.f32.mrb[0].mxu0
    %v119 = vadd.f32 %v38, %v118
    %v120 = vpop.f32.mrb[0].mxu0
    %v121 = vadd.f32 %v42, %v120
    %122 = vmatprep.mubr.f32.mxu0 0.0
    %123 = vmatmul.mubr.f32.gmra.mrb[0].mxu0 %v50
    %v124 = vpop.f32.mrb[0].mxu0
    %v125 = vadd.f32 %v38, %v124
    %v126 = vpop.f32.mrb[0].mxu0
    %v127 = vadd.f32 %v42, %v126
    %128 = vdwg.mxu0
    %129 = vst [vmem:[#allocation2] sm:$0xff] %v119
    %130 = vst [vmem:[#allocation2 + $0x8] sm:$0xff] %v121
    %131 = vst [vmem:[#allocation2 + $0x10] sm:$0xff] %v125
    %132 = vst [vmem:[#allocation2 + $0x18] sm:$0xff] %v127
    %p133 = scmp.eq.s32.totalorder 0, 0
    // Predicated region
    $region22: #{policy_and_value_forward.1} parent=1 // pred_check
      %p134 = pneg %p133
    $region23: #{policy_and_value_forward.1} parent=1 // pred_check_branch
      %136 = sbr.rel (%p134) target = $region25
    $region24: #{policy_and_value_forward.1} parent=1 // pred_region
      %v137 = vld [vmem:[%s3] sm:$0xff]
      %v138 = vld [vmem:[%s3 + $0x8] sm:$0xff]
      %v139 = vld [vmem:[%s3 + $0x10] sm:$0xff]
      %v140 = vld [vmem:[%s3 + $0x18] sm:$0xff]
      %v141 = vld [vmem:[%s4] sm:$0x1]
      %v143 = vlaneseq
      %v144 = vshrl.u32 %v143, 7
      %v145 = vsub.s32 0, %v144
      %v146 = vrot.slane %v141, %v145
      %148 = vmatprep.subr.mxu0 0.0
      %149 = vmatpush1.msra.mxu0 %v137
      %150 = vmatprep.subr.mxu0 0.0
      %151 = vmatpush1.msra.mxu0 %v138
      %152 = vmatprep.subr.mxu0 0.0
      %153 = vmatpush1.msra.mxu0 %v139
      %154 = vmatprep.subr.mxu0 0.0
      %155 = vmatpush1.msra.mxu0 %v140
      %156 = vmatprep.subr.mxu0 0.0
      %157 = vmatpush1.msra.mxu0 0.0
      %158 = vmatprep.subr.mxu0 0.0
      %159 = vmatpush1.msra.mxu0 0.0
      %160 = vmatprep.subr.mxu0 0.0
      %161 = vmatpush1.msra.mxu0 0.0
      %162 = vmatprep.subr.mxu0 0.0
      %163 = vmatpush1.msra.mxu0 0.0
      %164 = vmatprep.subr.mxu0 0.0
      %165 = vmatpush1.msra.mxu0 0.0
      %166 = vmatprep.subr.mxu0 0.0
      %167 = vmatpush1.msra.mxu0 0.0
      %168 = vmatprep.subr.mxu0 0.0
      %169 = vmatpush1.msra.mxu0 0.0
      %170 = vmatprep.subr.mxu0 0.0
      %171 = vmatpush1.msra.mxu0 0.0
      %172 = vmatprep.subr.mxu0 0.0
      %173 = vmatpush1.msra.mxu0 0.0
      %174 = vmatprep.subr.mxu0 0.0
      %175 = vmatpush1.msra.mxu0 0.0
      %176 = vmatprep.subr.mxu0 0.0
      %177 = vmatpush1.msra.mxu0 0.0
      %178 = vmatprep.subr.mxu0 0.0
      %179 = vmatpush1.msra.mxu0 0.0
      %180 = vmatprep.subr.mxu0 0.0
      %181 = vmatpush1.msra.mxu0 0.0
      %182 = vmatprep.subr.mxu0 0.0
      %183 = vmatpush1.msra.mxu0 0.0
      %184 = vmatprep.subr.mxu0 0.0
      %185 = vmatpush1.msra.mxu0 0.0
      %186 = vmatprep.subr.mxu0 0.0
      %187 = vmatpush1.msra.mxu0 0.0
      %188 = vmatprep.subr.mxu0 0.0
      %189 = vmatpush1.msra.mxu0 0.0
      %190 = vmatprep.subr.mxu0 0.0
      %191 = vmatpush1.msra.mxu0 0.0
      %192 = vmatprep.subr.mxu0 0.0
      %193 = vmatpush1.msra.mxu0 0.0
      %194 = vmatprep.subr.mxu0 0.0
      %195 = vmatpush1.msra.mxu0 0.0
      %196 = vmatprep.subr.mxu0 0.0
      %197 = vmatpush1.msra.mxu0 0.0
      %198 = vmatprep.subr.mxu0 0.0
      %199 = vmatpush1.msra.mxu0 0.0
      %200 = vmatprep.subr.mxu0 0.0
      %201 = vmatpush1.msra.mxu0 0.0
      %202 = vmatprep.subr.mxu0 0.0
      %203 = vmatpush1.msra.mxu0 0.0
      %204 = vmatprep.subr.mxu0 0.0
      %205 = vmatpush1.msra.mxu0 0.0
      %206 = vmatprep.subr.mxu0 0.0
      %207 = vmatpush1.msra.mxu0 0.0
      %208 = vmatprep.subr.mxu0 0.0
      %209 = vmatpush1.msra.mxu0 0.0
      %210 = vmatprep.subr.mxu0 0.0
      %211 = vmatpush1.msra.mxu0 0.0
      %212 = vmatprep.mubr.f32.mxu0 0.0
      %213 = vmatmul.mubr.f32.gmra.mrb[0].mxu0 %v47
      %v214 = vpop.f32.mrb[0].mxu0
      %v215 = vadd.f32 %v146, %v214
      %v216 = vpop.f32.mrb[0].mxu0
      %217 = vmatprep.mubr.f32.mxu0 0.0
      %218 = vmatmul.mubr.f32.gmra.mrb[0].mxu0 %v50
      %v219 = vpop.f32.mrb[0].mxu0
      %v220 = vadd.f32 %v146, %v219
      %v221 = vpop.f32.mrb[0].mxu0
      %222 = vdwg.mxu0
      %223 = vst [vmem:[%s6] sm:$0xff] %v215
      %224 = vst [vmem:[%s6 + $0x8] sm:$0xff] %v220
    $region25: #{policy_and_value_forward.1} parent=1 // pred_fallthru
      _
    // Predicated region
    $region26: #{policy_and_value_forward.1} parent=1 // pred_check
      _
    $region27: #{policy_and_value_forward.1} parent=1 // pred_check_branch
      %226 = sbr.rel (0) target = $region29
    $region28: #{policy_and_value_forward.1} parent=1 // pred_region
      %s228 = ssub.s32 512, 512
      %229 = vsyncadd [#allocation3], %s228
      %s230 = sshll.u32 [#allocation2], 4
      %s231 = int_to_ptr.vmem [resolvable:$true] %s230
      %236 = dma.vmem_to_hbm [thread:$0]  %s231, 512, %s5, [#allocation3], 256, 256, 16
    $region29: #{policy_and_value_forward.1} parent=1 // pred_fallthru
      _
    // Predicated region
    $region30: #{policy_and_value_forward.1} parent=1 // pred_check
      _
    $region31: #{policy_and_value_forward.1} parent=1 // pred_check_branch
      %238 = sbr.rel (0) target = $region33
    $region32: #{policy_and_value_forward.1} parent=1 // pred_region
      _
    $region33: #{policy_and_value_forward.1} parent=1 // pred_fallthru
      _
    // Predicated region
    $region34: #{policy_and_value_forward.1} parent=1 // pred_check
      _
    $region35: #{policy_and_value_forward.1} parent=1 // pred_check_branch
      %240 = sbr.rel (0) target = $region37
    $region36: #{policy_and_value_forward.1} parent=1 // pred_region
      %241 = dma.done [#allocation3], 512
    $region37: #{policy_and_value_forward.1} parent=1 // pred_fallthru
      _
    // Predicated region
    $region38: #{policy_and_value_forward.1} parent=1 // pred_check
      _
    $region39: #{policy_and_value_forward.1} parent=1 // pred_check_branch
      %243 = sbr.rel (0) target = $region41
    $region40: #{policy_and_value_forward.1} parent=1 // pred_region
      _
    $region41: #{policy_and_value_forward.1} parent=1 // pred_fallthru
      _
    %244 = vsyncpa [#allocation3], 1

</llo_original>
